<compile_context>
chip_gen: v5e
topology: v5e:2x2
jax: 0.10.0
libtpu: 0.0.40
codegen_flags: <defaults>
</compile_context>

<pallas_src>
import numpy as np

import jax
import jax.numpy as jnp
from jax.experimental import pallas as pl
from jax.experimental.pallas import tpu as pltpu


def _step_kernel(thr_ref, x_ref, o_ref):
    # thr_ref is a (1, 1) float32 scalar in SMEM; cast to the input dtype to
    # mirror torch.ones_like(inputs) * threshold.
    thr = thr_ref[0, 0].astype(x_ref.dtype)
    # where(x <= threshold, 0, 1); NaN compares false -> 1, matching torch.
    # (Do NOT rewrite as (x > thr) — that flips the NaN result.)
    o_ref[...] = jnp.where(x_ref[...] <= thr, 0, 1).astype(o_ref.dtype)


def _min_sublane(dtype) -> int:
    """Minimum second-to-last block dim for a dtype's TPU tiling."""
    itemsize = np.dtype(dtype).itemsize
    return max(8, 32 // max(1, min(itemsize, 4)))   # 8 / 16 / 32


def _target_rows(out_itemsize: int) -> int:
    """Rows per block (lane width fixed at 128)."""
    kind = ""
    try:
        kind = jax.devices()[0].device_kind.lower()
    except Exception:
        pass
    if "v7" in kind:
        # v7x: ~3.2 TB/s HBM — bigger blocks amortize the ~0.35 us/step
        # overhead.  8192x128 f32 = 4 MiB in; double-buffered in+out stays
        # well under the 32 MiB scoped / 64 MiB physical VMEM.
        return 8192
    if out_itemsize <= 1:
        # 1-byte output: 2 x (4 + 1) MiB = 10 MiB live, fits even v5e's
        # 16 MiB default scoped VMEM.
        return 8192
    # v5e/v6e with a 32-bit output: 2 x (2 + 2) MiB = 8 MiB live.
    return 4096


def step_function(x: jax.Array, threshold: float = 0.1,
                  out_dtype=jnp.int8) -> jax.Array:
    """Elementwise step: 0 where x <= threshold else 1, same shape as x."""
    orig_shape = x.shape
    n = x.size
    lane = 128
    out_itemsize = int(np.dtype(out_dtype).itemsize)

    x_flat = x.reshape(-1)
    n_main = (n // lane) * lane
    if n_main == 0:
        # Empty or sub-128-element input: a kernel launch isn't worth it.
        return jnp.where(x <= jnp.asarray(threshold, x.dtype), 0, 1).astype(out_dtype)

    # Lane-dense 2D view of the 128-aligned prefix (no padding pass).
    x_main = x_flat if n_main == n else x_flat[:n_main]
    rows = n_main // lane
    x2d = x_main.reshape(rows, lane)

    # Sublane alignment must satisfy BOTH the input and output tilings.
    sub = max(_min_sublane(x.dtype), _min_sublane(out_dtype))
    target_rows = _target_rows(out_itemsize)

    if rows <= sub:
        # Full-array block is always legal regardless of alignment.
        block_rows = rows
    else:
        # Aim for >= 8 grid steps before clamping to target_rows so each
        # TensorCore keeps prefetch/compute/writeback overlapped (and both
        # v7x cores get several blocks each).
        min_steps = 8
        step_rows = -(-rows // min_steps)            # ceil(rows / min_steps)
        step_rows = -(-step_rows // sub) * sub       # round up to sublane mult
        block_rows = max(sub, min(target_rows, step_rows))
    grid = (pl.cdiv(rows, block_rows),)              # ragged tail blocks masked by Pallas

    thr = jnp.full((1, 1), threshold, dtype=jnp.float32)

    cost = pl.CostEstimate(
        flops=n_main,
        transcendentals=0,
        bytes_accessed=n_main * (int(np.dtype(x.dtype).itemsize) + out_itemsize),
    )

    out2d = pl.pallas_call(
        _step_kernel,
        out_shape=jax.ShapeDtypeStruct((rows, lane), out_dtype),
        grid_spec=pltpu.PrefetchScalarGridSpec(
            num_scalar_prefetch=0,
            grid=grid,
            in_specs=[
                pl.BlockSpec(memory_space=pltpu.MemorySpace.SMEM),   # threshold
                pl.BlockSpec((block_rows, lane), lambda i: (i, 0)),  # x
            ],
            out_specs=pl.BlockSpec((block_rows, lane), lambda i: (i, 0)),
        ),
        compiler_params=pltpu.CompilerParams(
            dimension_semantics=("parallel",),
        ),
        cost_estimate=cost,
    )(thr, x2d)

    out_flat = out2d.reshape(-1)
    if n_main != n:
        # <128-element ragged tail: plain jnp.where, then concat (only the
        # cheap int8 output gets an extra pass, never the f32 input).
        tail = x_flat[n_main:]
        tail_out = jnp.where(tail <= jnp.asarray(threshold, x.dtype), 0, 1).astype(out_dtype)
        out_flat = jnp.concatenate([out_flat, tail_out])
    return out_flat.reshape(orig_shape)


if __name__ == "__main__":
    key = jax.random.PRNGKey(0)
    k0, k1 = jax.random.split(key)
    threshold = 0.1

    # 4D input (b_size, c, h, w) consistent with the module's forward.
    x = jax.random.uniform(k0, (2, 4, 16, 16), dtype=jnp.float32,
                           minval=-0.5, maxval=0.5)

    out = step_function(x, threshold=threshold)            # default int8 out
    jax.block_until_ready(out)
    ref = jnp.where(x <= jnp.ones_like(x) * threshold, 0, 1).astype(jnp.int8)
    assert out.shape == x.shape
    assert out.dtype == jnp.int8
    assert bool(jnp.all(out == ref))

    # Wide-output variant (values identical).
    out32 = step_function(x, threshold=threshold, out_dtype=jnp.int32)
    jax.block_until_ready(out32)
    assert out32.dtype == jnp.int32
    assert bool(jnp.all(out32 == ref.astype(jnp.int32)))

    # Ragged (non-multiple-of-128) size exercises the pad-free tail path.
    y = jax.random.uniform(k1, (5, 131), dtype=jnp.float32,
                           minval=-0.5, maxval=0.5)
    out_y = step_function(y, threshold=threshold)
    jax.block_until_ready(out_y)
    ref_y = jnp.where(y <= jnp.ones_like(y) * threshold, 0, 1).astype(jnp.int8)
    assert out_y.shape == y.shape
    assert bool(jnp.all(out_y == ref_y))

    print("KERNEL_OK")
</pallas_src>

<mosaic_0001>
module attributes {stable_mosaic.version = 11 : i64} {
  func.func @_step_kernel(%arg0: i32, %arg1: memref<1x1xf32, #tpu.memory_space<smem>>, %arg2: memref<16x128xf32, #tpu.memory_space<vmem>>, %arg3: memref<16x128xi8, #tpu.memory_space<vmem>>) attributes {dimension_semantics = [#tpu.dimension_semantics<parallel>], iteration_bounds = array<i64: 1>, scalar_prefetch = 0 : i64, scratch_operands = 0 : i64, tpu.core_type = #tpu.core_type<tc>, window_params = [{transform_indices = @transform_0, window_bounds = array<i64: 1, 1>}, {transform_indices = @transform_1, window_bounds = array<i64: 16, 128>}, {transform_indices = @transform_2, window_bounds = array<i64: 16, 128>}]} {
    %c0 = arith.constant 0 : index
    %c0_0 = arith.constant 0 : index
    %0 = memref.load %arg1[%c0, %c0_0] : memref<1x1xf32, #tpu.memory_space<smem>>
    %c0_1 = arith.constant 0 : index
    %c0_2 = arith.constant 0 : index
    %1 = vector.load %arg2[%c0_1, %c0_2] : memref<16x128xf32, #tpu.memory_space<vmem>>, vector<16x128xf32>
    %2 = vector.broadcast %0 : f32 to vector<16x128xf32>
    %3 = arith.cmpf ole, %1, %2 : vector<16x128xf32>
    %c0_i32 = arith.constant 0 : i32
    %c1_i32 = arith.constant 1 : i32
    %4 = vector.broadcast %c0_i32 : i32 to vector<16x128xi32>
    %5 = vector.broadcast %c1_i32 : i32 to vector<16x128xi32>
    %6 = arith.select %3, %4, %5 : vector<16x128xi1>, vector<16x128xi32>
    %7 = arith.trunci %6 : vector<16x128xi32> to vector<16x128xi8>
    %c0_3 = arith.constant 0 : index
    %c0_4 = arith.constant 0 : index
    %8 = vector.load %arg3[%c0_3, %c0_4] : memref<16x128xi8, #tpu.memory_space<vmem>>, vector<16x128xi8>
    tpu.vector_store %arg3[%c0_3, %c0_4], %7 {strides = array<i32>} : memref<16x128xi8, #tpu.memory_space<vmem>>, vector<16x128xi8>,
    return
  }
  func.func @transform_0(%arg0: i32) -> (i32, i32) {
    %c0_i32 = arith.constant 0 : i32
    %c0_i32_0 = arith.constant 0 : i32
    %c0_i32_1 = arith.constant 0 : i32
    return %c0_i32, %c0_i32_0 : i32, i32
  }
  func.func @transform_1(%arg0: i32) -> (i32, i32) {
    %c0_i32 = arith.constant 0 : i32
    %c0_i32_0 = arith.constant 0 : i32
    return %arg0, %c0_i32 : i32, i32
  }
  func.func @transform_2(%arg0: i32) -> (i32, i32) {
    %c0_i32 = arith.constant 0 : i32
    %c0_i32_0 = arith.constant 0 : i32
    return %arg0, %c0_i32 : i32, i32
  }
}

</mosaic_0001>

<llo_original>
// kernel: tpu_custom_call.1
$region0: #{tpu_custom_call.1}
  #allocation0 [shape = 'u32[]', space=smem, size = 0x4, offset = 0x4, fixed_abs, tag = 'smem constant byte address 0x4 - core index']
  #allocation1 [shape = 'u32[72,128]{1,0:T(1,128)}', space=vmem, size = 0x9000, scoped, tag = 'internal scratch']
  #allocation2 [shape = 'f32[1,1]{1,0:T(1,128)S(6)}', space=smem, size = 0x200, scoped, tag = 'scoped memory for tpu_custom_call.1']
  %s0 = inlined_call_operand.<no memory space> [shape: f32[1,1], index: 0, kind: input, shape index: {}]
  %s1 = inlined_call_operand.hbm [shape: f32[16,128], index: 1, kind: input, shape index: {}]
  %s2 = inlined_call_operand.hbm [shape: s8[16,128], index: 2, kind: output, shape index: {}]
  %s3 = sld [smem:[#allocation0]]
  $region22: #{tpu_custom_call.1} parent=0
    _
  %s5 = ssub.s32 1, %s3
  %s6 = scalar_select 0, %s5, %s3
  %7 = sst [smem:[#allocation2]] %s0
  $region1: #{tpu_custom_call.1} parent=0
    #allocation3 [shape = 'u8[8192]{0}', space=vmem, size = 0x2000, scoped, tag = 'input window, operand 1, single buffered']
    #allocation4 [shape = 's32[1]{0}', space=sflag, size = 0x4, scoped, tag = 'scoped memory for tpu_custom_call.1']
    #allocation5 [shape = 's32[1]{0}', space=sflag, size = 0x4, scoped, tag = 'scoped memory for tpu_custom_call.1']
    #allocation6 [shape = 'u8[2048]{0}', space=vmem, size = 0x800, scoped, tag = 'output window, operand 0, single buffered']
    %8 = vsyncpa [#allocation4], 0
    %9 = vsyncpa [#allocation5], 0
    // Predicated region
    $region2: #{tpu_custom_call.1} parent=1 // pred_check
      _
    $region3: #{tpu_custom_call.1} parent=1 // pred_check_branch
      %11 = sbr.rel (0) target = $region5
    $region4: #{tpu_custom_call.1} parent=1 // pred_region
      _
    $region5: #{tpu_custom_call.1} parent=1 // pred_fallthru
      _
    // Predicated region
    $region6: #{tpu_custom_call.1} parent=1 // pred_check
      _
    $region7: #{tpu_custom_call.1} parent=1 // pred_check_branch
      %13 = sbr.rel (0) target = $region9
    $region8: #{tpu_custom_call.1} parent=1 // pred_region
      %15 = vsyncadd [#allocation4], 0
      %s16 = sshll.u32 %s1, 4
      %s17 = int_to_ptr.hbm [resolvable:$true] %s16
      %s18 = sshll.u32 [#allocation3], 4
      %s19 = int_to_ptr.vmem [resolvable:$true] %s18
      %24 = dma.hbm_to_vmem [thread:$0]  %s17, 256, %s19, [#allocation4], 128, 128, 8
    $region9: #{tpu_custom_call.1} parent=1 // pred_fallthru
      _
    // Predicated region
    $region10: #{tpu_custom_call.1} parent=1 // pred_check
      _
    $region11: #{tpu_custom_call.1} parent=1 // pred_check_branch
      %26 = sbr.rel (0) target = $region13
    $region12: #{tpu_custom_call.1} parent=1 // pred_region
      %28 = dma.done [#allocation4], 256
    $region13: #{tpu_custom_call.1} parent=1 // pred_fallthru
      _
    %s29 = sld [smem:[#allocation2]]
    %v30 = vld [vmem:[#allocation3] sm:$0xff]
    %v31 = vld [vmem:[#allocation3 + $0x8] sm:$0xff]
    %v32 = vstv %s29
    %vm33 = vcmp.le.f32.partialorder %v30, %v32
    %vm34 = vcmp.le.f32.partialorder %v31, %v32
    %v35 = vsel %vm33, 0, 1
    %v36 = vsel %vm34, 0, 1
    %v37 = vpack.c.b16 %v35, %v35
    %v38 = vpack.c.b8 %v37, %v37
    %v39 = vpack.c.b16 %v36, %v36
    %v40 = vpack.c.b8 %v39, %v39
    %41 = vst [vmem:[#allocation6] sm:$0x3] %v38
    %42 = vst [vmem:[#allocation6 + $0x2] sm:$0x3] %v40
    // Predicated region
    $region14: #{tpu_custom_call.1} parent=1 // pred_check
      _
    $region15: #{tpu_custom_call.1} parent=1 // pred_check_branch
      %44 = sbr.rel (0) target = $region17
    $region16: #{tpu_custom_call.1} parent=1 // pred_region
      %46 = vsyncadd [#allocation5], 0
      %s47 = sshll.u32 [#allocation6], 4
      %s48 = int_to_ptr.vmem [resolvable:$true] %s47
      %s49 = sshll.u32 %s2, 4
      %s50 = int_to_ptr.hbm [resolvable:$true] %s49
      %55 = dma.vmem_to_hbm [thread:$0]  %s48, 64, %s50, [#allocation5], 32, 32, 2
    $region17: #{tpu_custom_call.1} parent=1 // pred_fallthru
      _
    // Predicated region
    $region18: #{tpu_custom_call.1} parent=1 // pred_check
      _
    $region19: #{tpu_custom_call.1} parent=1 // pred_check_branch
      %57 = sbr.rel (0) target = $region21
    $region20: #{tpu_custom_call.1} parent=1 // pred_region
      %59 = dma.done [#allocation5], 64
    $region21: #{tpu_custom_call.1} parent=1 // pred_fallthru
      _
    %60 = vsyncpa [#allocation4], 1
    %61 = vsyncpa [#allocation5], 1

</llo_original>
